<compile_context>
chip_gen: v7x
topology: tpu7x:2x2x1
jax: 0.10.0
libtpu: 0.0.40
codegen_flags: <defaults>
</compile_context>

<pallas_src>
import functools

import jax
import jax.numpy as jnp
from jax.experimental import pallas as pl
from jax.experimental.pallas import tpu as pltpu


def _round_up(x, m):
    return ((x + m - 1) // m) * m


def critic_kernel(x_ref, a_ref,
                  w1_ref, b1_ref,
                  w2_ref, b2_ref,
                  w3_ref, b3_ref,
                  w5_ref, b5_ref,
                  out_ref,
                  xa_ref, *, n_states, n_actions):
    cd = w1_ref.dtype            # matmul-operand dtype; accumulation stays f32

    # Pack [x | a | 0-pad] into one (TB, K1) scratch so fc1 is a single MXU dot
    # against the zero-row-padded W1.  The scratch is re-zeroed every step:
    # cheap (TB*K1/1024 vector stores), and required because megacore sharding
    # of the "parallel" batch axis means a core may never see program_id == 0.
    xa_ref[...] = jnp.zeros_like(xa_ref)
    xa_ref[:, pl.ds(0, n_states)] = x_ref[...]
    xa_ref[:, pl.ds(n_states, n_actions)] = a_ref[...]
    xa = xa_ref[...].astype(cd)                                   # [TB, K1]

    h1 = jnp.dot(xa, w1_ref[...], preferred_element_type=jnp.float32) + b1_ref[...]
    h1 = jnp.maximum(h1, 0.0).astype(cd)                          # [TB, 256]

    h2 = jnp.dot(h1, w2_ref[...], preferred_element_type=jnp.float32) + b2_ref[...]
    h2 = jnp.maximum(h2, 0.0).astype(cd)                          # [TB, 128]

    h3 = jnp.dot(h2, w3_ref[...], preferred_element_type=jnp.float32) + b3_ref[...]
    h3 = jnp.maximum(h3, 0.0)                                     # [TB, 128] f32

    # fc5 (128 -> 1): an N=1 MXU matmul uses one output lane and still pays a
    # full push+drain -> do it on the otherwise-idle VPU/XLU slots instead.
    w5_row = w5_ref[...].astype(jnp.float32)                      # [1, 128]
    q = jnp.sum(h3 * w5_row, axis=-1, keepdims=True) + b5_ref[...]
    out_ref[...] = q.astype(out_ref.dtype)                        # [TB, 1]


def _resident_spec(shape):
    # Same block for every grid step -> weight/bias stays VMEM-resident across
    # the batch loop.  `shape` is bound per call (no late-binding closure bug).
    return pl.BlockSpec(shape, lambda *grid_idx: (0,) * len(shape))


def prepare_critic_params(params, n_states, n_actions,
                          compute_dtype=jnp.bfloat16):
    """One-time parameter preparation (do this OUTSIDE the training step).

    * W1 ([n_states+n_actions, 256]) is zero-padded to a 128-row multiple so
      the in-kernel [x | a | 0] pack multiplies against it exactly.
    * w1/w2/w3 are pre-cast to `compute_dtype` (default bf16 on all chips) so
      the per-step forward contains no slice/convert ops -- only pallas_call.
    * fc5's weight stays an f32 [1, 128] row (VPU/XLU reduce, not MXU).
    """
    w1, b1, w2, b2, w3, b3, w5_row, b5 = params
    k_in = n_states + n_actions
    k1 = _round_up(max(k_in, 1), 128)
    w1p = jnp.zeros((k1, w1.shape[1]), w1.dtype).at[:k_in].set(w1)
    return (w1p.astype(compute_dtype), b1.astype(jnp.float32),
            w2.astype(compute_dtype), b2.astype(jnp.float32),
            w3.astype(compute_dtype), b3.astype(jnp.float32),
            w5_row.astype(jnp.float32), b5.astype(jnp.float32))


@functools.partial(jax.jit, static_argnames=("block_b",))
def critic_forward(x, a, prepared_params, block_b=2048):
    """x: [B, n_states] f32, a: [B, n_actions] f32 -> q: [B, 1] f32.

    `prepared_params` must come from prepare_critic_params(); this function is
    a bare pallas_call (no per-call parameter slicing / casting).
    """
    B, n_states = x.shape
    n_actions = a.shape[1]
    w1p, b1, w2, b2, w3, b3, w5_row, b5 = prepared_params
    K1, H1 = w1p.shape
    H2 = w2.shape[1]
    H3 = w3.shape[1]

    # Batch tiling.  Small batches run in a single grid step (latency-bound
    # regime: per-step overhead ~0.35us dwarfs the MXU work).  For B >= 1024
    # force >= 2 steps so the "parallel" axis can shard across both v7x
    # TensorCores; on single-core chips the extra step is noise at that size.
    # TB stays a multiple of 8 whenever TB < B.
    if B < 1024 and B <= block_b:
        TB = B
    else:
        TB = max(8, min(block_b, _round_up(pl.cdiv(B, 2), 8)))
    grid = (pl.cdiv(B, TB),)

    def batch_spec(feat):
        return pl.BlockSpec((TB, feat), lambda i: (i, 0))

    args = (x, a, w1p, b1, w2, b2, w3, b3, w5_row, b5)
    in_specs = [
        batch_spec(n_states),           # x
        batch_spec(n_actions),          # a
        _resident_spec(w1p.shape),
        _resident_spec(b1.shape),
        _resident_spec(w2.shape),
        _resident_spec(b2.shape),
        _resident_spec(w3.shape),
        _resident_spec(b3.shape),
        _resident_spec(w5_row.shape),
        _resident_spec(b5.shape),
    ]

    flops = 2 * B * (K1 * H1 + H1 * H2 + H2 * H3 + H3)
    bytes_accessed = int(
        (x.size + a.size + B) * 4
        + sum(int(p.size) * p.dtype.itemsize for p in prepared_params))

    return pl.pallas_call(
        functools.partial(critic_kernel, n_states=n_states,
                          n_actions=n_actions),
        out_shape=jax.ShapeDtypeStruct((B, 1), jnp.float32),
        grid=grid,
        in_specs=in_specs,
        out_specs=pl.BlockSpec((TB, 1), lambda i: (i, 0)),
        scratch_shapes=[pltpu.VMEM((TB, K1), jnp.float32)],
        compiler_params=pltpu.CompilerParams(
            dimension_semantics=("parallel",),
            # Explicit VMEM budget: 32 MiB fits every chip's physical VMEM
            # (v7x: 64 MiB) and raises v5e's 16 MiB default scoped limit.
            vmem_limit_bytes=32 * 1024 * 1024),
        cost_estimate=pl.CostEstimate(
            flops=flops, transcendentals=0, bytes_accessed=bytes_accessed),
    )(*args)


def init_critic_params(key, n_states, n_actions):
    """PyTorch nn.Linear-style init (U[-1/sqrt(fan_in), +1/sqrt(fan_in)]).

    w1, w2, w3 are stored as [in_features, out_features] (transposed vs
    PyTorch) so each layer is y = x @ W + b; w5 is stored as a [1, 128] row
    (identical to PyTorch's fc5.weight layout) because fc5 is a VPU reduce.
    Biases are [1, out_features].
    """
    dims = [(n_states + n_actions, 256), (256, 128), (128, 128), (128, 1)]
    params = []
    for i, (fan_in, fan_out) in enumerate(dims):
        kw, kb, key = jax.random.split(key, 3)
        bound = 1.0 / (fan_in ** 0.5)
        if i == len(dims) - 1:
            w = jax.random.uniform(kw, (fan_out, fan_in), jnp.float32, -bound, bound)
        else:
            w = jax.random.uniform(kw, (fan_in, fan_out), jnp.float32, -bound, bound)
        b = jax.random.uniform(kb, (1, fan_out), jnp.float32, -bound, bound)
        params += [w, b]
    return tuple(params)


if __name__ == "__main__":
    n_states, n_actions, batch = 8, 4, 8

    key = jax.random.PRNGKey(0)
    kx, ka, kp = jax.random.split(key, 3)
    x = jax.random.normal(kx, (batch, n_states), dtype=jnp.float32)
    a = jax.random.normal(ka, (batch, n_actions), dtype=jnp.float32)
    params = init_critic_params(kp, n_states, n_actions)

    # Pure-JAX reference (matches the PyTorch module, f32 throughout).
    w1, b1, w2, b2, w3, b3, w5_row, b5 = params

    def ref(xx, aa):
        h = jnp.maximum(jnp.concatenate([xx, aa], axis=1) @ w1 + b1, 0.0)
        h = jnp.maximum(h @ w2 + b2, 0.0)
        h = jnp.maximum(h @ w3 + b3, 0.0)
        return h @ w5_row.T + b5

    q_ref = ref(x, a)

    # Exact f32-weight path (bit-accurate validation): tight tolerance.
    params_f32 = prepare_critic_params(params, n_states, n_actions,
                                       compute_dtype=jnp.float32)
    q_f32 = jax.block_until_ready(critic_forward(x, a, params_f32))
    assert q_f32.shape == (batch, 1)
    assert jnp.allclose(q_f32, q_ref, atol=1e-4, rtol=1e-4)

    # Default bf16-operand / f32-accumulate path (all chips): looser tolerance.
    params_bf16 = prepare_critic_params(params, n_states, n_actions)
    q_bf16 = jax.block_until_ready(critic_forward(x, a, params_bf16))
    assert q_bf16.shape == (batch, 1)
    assert jnp.allclose(q_bf16, q_ref, atol=5e-2, rtol=5e-2)

    # Exercise the multi-step grid + partial final tile path (kept small).
    B2 = 40
    kx2, ka2 = jax.random.split(jax.random.PRNGKey(1))
    x2 = jax.random.normal(kx2, (B2, n_states), dtype=jnp.float32)
    a2 = jax.random.normal(ka2, (B2, n_actions), dtype=jnp.float32)
    q2 = jax.block_until_ready(critic_forward(x2, a2, params_f32, block_b=16))
    assert q2.shape == (B2, 1)
    assert jnp.allclose(q2, ref(x2, a2), atol=1e-4, rtol=1e-4)

    print("KERNEL_OK")
</pallas_src>

<mosaic_0001>
module attributes {stable_mosaic.version = 11 : i64} {
  func.func @critic_kernel(%arg0: i32, %arg1: memref<8x8xf32, #tpu.memory_space<vmem>>, %arg2: memref<8x4xf32, #tpu.memory_space<vmem>>, %arg3: memref<128x256xf32, #tpu.memory_space<vmem>>, %arg4: memref<1x256xf32, #tpu.memory_space<vmem>>, %arg5: memref<256x128xf32, #tpu.memory_space<vmem>>, %arg6: memref<1x128xf32, #tpu.memory_space<vmem>>, %arg7: memref<128x128xf32, #tpu.memory_space<vmem>>, %arg8: memref<1x128xf32, #tpu.memory_space<vmem>>, %arg9: memref<1x128xf32, #tpu.memory_space<vmem>>, %arg10: memref<1x1xf32, #tpu.memory_space<vmem>>, %arg11: memref<8x1xf32, #tpu.memory_space<vmem>>, %arg12: memref<8x128xf32, #tpu.memory_space<vmem>>) attributes {dimension_semantics = [#tpu.dimension_semantics<parallel>], iteration_bounds = array<i64: 1>, scalar_prefetch = 0 : i64, scratch_operands = 1 : i64, tpu.core_type = #tpu.core_type<tc>, window_params = [{transform_indices = @transform_0, window_bounds = array<i64: 8, 8>}, {transform_indices = @transform_1, window_bounds = array<i64: 8, 4>}, {pipeline_mode = #tpu.pipeline_mode<synchronous>, transform_indices = @transform_2, window_bounds = array<i64: 128, 256>}, {pipeline_mode = #tpu.pipeline_mode<synchronous>, transform_indices = @transform_3, window_bounds = array<i64: 1, 256>}, {pipeline_mode = #tpu.pipeline_mode<synchronous>, transform_indices = @transform_4, window_bounds = array<i64: 256, 128>}, {pipeline_mode = #tpu.pipeline_mode<synchronous>, transform_indices = @transform_5, window_bounds = array<i64: 1, 128>}, {pipeline_mode = #tpu.pipeline_mode<synchronous>, transform_indices = @transform_6, window_bounds = array<i64: 128, 128>}, {pipeline_mode = #tpu.pipeline_mode<synchronous>, transform_indices = @transform_7, window_bounds = array<i64: 1, 128>}, {pipeline_mode = #tpu.pipeline_mode<synchronous>, transform_indices = @transform_8, window_bounds = array<i64: 1, 128>}, {pipeline_mode = #tpu.pipeline_mode<synchronous>, transform_indices = @transform_9, window_bounds = array<i64: 1, 1>}, {transform_indices = @transform_10, window_bounds = array<i64: 8, 1>}]} {
    %cst = arith.constant 0.000000e+00 : f32
    %0 = vector.broadcast %cst : f32 to vector<8x128xf32>
    %c0 = arith.constant 0 : index
    %c0_0 = arith.constant 0 : index
    %1 = vector.load %arg12[%c0, %c0_0] : memref<8x128xf32, #tpu.memory_space<vmem>>, vector<8x128xf32>
    tpu.vector_store %arg12[%c0, %c0_0], %0 {strides = array<i32>} : memref<8x128xf32, #tpu.memory_space<vmem>>, vector<8x128xf32>,
    %c0_1 = arith.constant 0 : index
    %c0_2 = arith.constant 0 : index
    %2 = vector.load %arg1[%c0_1, %c0_2] : memref<8x8xf32, #tpu.memory_space<vmem>>, vector<8x8xf32>
    %c0_3 = arith.constant 0 : index
    %c0_4 = arith.constant 0 : index
    %3 = vector.load %arg12[%c0_3, %c0_4] : memref<8x128xf32, #tpu.memory_space<vmem>>, vector<8x8xf32>
    tpu.vector_store %arg12[%c0_3, %c0_4], %2 {strides = array<i32>} : memref<8x128xf32, #tpu.memory_space<vmem>>, vector<8x8xf32>,
    %c0_5 = arith.constant 0 : index
    %c0_6 = arith.constant 0 : index
    %4 = vector.load %arg2[%c0_5, %c0_6] : memref<8x4xf32, #tpu.memory_space<vmem>>, vector<8x4xf32>
    %c0_7 = arith.constant 0 : index
    %c8 = arith.constant 8 : index
    %5 = vector.load %arg12[%c0_7, %c8] : memref<8x128xf32, #tpu.memory_space<vmem>>, vector<8x4xf32>
    tpu.vector_store %arg12[%c0_7, %c8], %4 {strides = array<i32>} : memref<8x128xf32, #tpu.memory_space<vmem>>, vector<8x4xf32>,
    %c0_8 = arith.constant 0 : index
    %c0_9 = arith.constant 0 : index
    %6 = vector.load %arg12[%c0_8, %c0_9] : memref<8x128xf32, #tpu.memory_space<vmem>>, vector<8x128xf32>
    %c0_10 = arith.constant 0 : index
    %c0_11 = arith.constant 0 : index
    %7 = vector.load %arg3[%c0_10, %c0_11] : memref<128x256xf32, #tpu.memory_space<vmem>>, vector<128x256xf32>
    %cst_12 = arith.constant dense<0.000000e+00> : vector<8x256xf32>
    %8 = tpu.matmul %6, %7, %cst_12 {dimension_numbers = #tpu.dot_dimension_numbers<[1], [0], [0], [1], [0, 0, 1, 1], [], []>} : vector<8x128xf32>, vector<128x256xf32>, vector<8x256xf32> -> vector<8x256xf32>
    %c0_13 = arith.constant 0 : index
    %c0_14 = arith.constant 0 : index
    %9 = vector.load %arg4[%c0_13, %c0_14] : memref<1x256xf32, #tpu.memory_space<vmem>>, vector<1x256xf32>
    %10 = vector.broadcast %9 : vector<1x256xf32> to vector<8x256xf32>
    %11 = arith.addf %8, %10 : vector<8x256xf32>
    %cst_15 = arith.constant 0.000000e+00 : f32
    %12 = vector.broadcast %cst_15 : f32 to vector<8x256xf32>
    %13 = arith.maximumf %11, %12 : vector<8x256xf32>
    %c0_16 = arith.constant 0 : index
    %c0_17 = arith.constant 0 : index
    %14 = vector.load %arg5[%c0_16, %c0_17] : memref<256x128xf32, #tpu.memory_space<vmem>>, vector<256x128xf32>
    %cst_18 = arith.constant dense<0.000000e+00> : vector<8x128xf32>
    %15 = tpu.matmul %13, %14, %cst_18 {dimension_numbers = #tpu.dot_dimension_numbers<[1], [0], [0], [1], [0, 0, 1, 1], [], []>} : vector<8x256xf32>, vector<256x128xf32>, vector<8x128xf32> -> vector<8x128xf32>
    %c0_19 = arith.constant 0 : index
    %c0_20 = arith.constant 0 : index
    %16 = vector.load %arg6[%c0_19, %c0_20] : memref<1x128xf32, #tpu.memory_space<vmem>>, vector<1x128xf32>
    %17 = vector.broadcast %16 : vector<1x128xf32> to vector<8x128xf32>
    %18 = arith.addf %15, %17 : vector<8x128xf32>
    %cst_21 = arith.constant 0.000000e+00 : f32
    %19 = vector.broadcast %cst_21 : f32 to vector<8x128xf32>
    %20 = arith.maximumf %18, %19 : vector<8x128xf32>
    %c0_22 = arith.constant 0 : index
    %c0_23 = arith.constant 0 : index
    %21 = vector.load %arg7[%c0_22, %c0_23] : memref<128x128xf32, #tpu.memory_space<vmem>>, vector<128x128xf32>
    %cst_24 = arith.constant dense<0.000000e+00> : vector<8x128xf32>
    %22 = tpu.matmul %20, %21, %cst_24 {dimension_numbers = #tpu.dot_dimension_numbers<[1], [0], [0], [1], [0, 0, 1, 1], [], []>} : vector<8x128xf32>, vector<128x128xf32>, vector<8x128xf32> -> vector<8x128xf32>
    %c0_25 = arith.constant 0 : index
    %c0_26 = arith.constant 0 : index
    %23 = vector.load %arg8[%c0_25, %c0_26] : memref<1x128xf32, #tpu.memory_space<vmem>>, vector<1x128xf32>
    %24 = vector.broadcast %23 : vector<1x128xf32> to vector<8x128xf32>
    %25 = arith.addf %22, %24 : vector<8x128xf32>
    %cst_27 = arith.constant 0.000000e+00 : f32
    %26 = vector.broadcast %cst_27 : f32 to vector<8x128xf32>
    %27 = arith.maximumf %25, %26 : vector<8x128xf32>
    %c0_28 = arith.constant 0 : index
    %c0_29 = arith.constant 0 : index
    %28 = vector.load %arg9[%c0_28, %c0_29] : memref<1x128xf32, #tpu.memory_space<vmem>>, vector<1x128xf32>
    %29 = vector.broadcast %28 : vector<1x128xf32> to vector<8x128xf32>
    %30 = arith.mulf %27, %29 : vector<8x128xf32>
    %cst_30 = arith.constant dense<0.000000e+00> : vector<8xf32>
    %31 = vector.multi_reduction <add>, %30, %cst_30 [1] : vector<8x128xf32> to vector<8xf32>
    %32 = vector.shape_cast %31 : vector<8xf32> to vector<8x1xf32>
    %c0_31 = arith.constant 0 : index
    %c0_32 = arith.constant 0 : index
    %33 = vector.load %arg10[%c0_31, %c0_32] : memref<1x1xf32, #tpu.memory_space<vmem>>, vector<1x1xf32>
    %34 = vector.broadcast %33 : vector<1x1xf32> to vector<8x1xf32>
    %35 = arith.addf %32, %34 : vector<8x1xf32>
    %c0_33 = arith.constant 0 : index
    %c0_34 = arith.constant 0 : index
    %36 = vector.load %arg11[%c0_33, %c0_34] : memref<8x1xf32, #tpu.memory_space<vmem>>, vector<8x1xf32>
    tpu.vector_store %arg11[%c0_33, %c0_34], %35 {strides = array<i32>} : memref<8x1xf32, #tpu.memory_space<vmem>>, vector<8x1xf32>,
    return
  }
  func.func @transform_0(%arg0: i32) -> (i32, i32) {
    %c0_i32 = arith.constant 0 : i32
    %c0_i32_0 = arith.constant 0 : i32
    return %arg0, %c0_i32 : i32, i32
  }
  func.func @transform_1(%arg0: i32) -> (i32, i32) {
    %c0_i32 = arith.constant 0 : i32
    %c0_i32_0 = arith.constant 0 : i32
    return %arg0, %c0_i32 : i32, i32
  }
  func.func @transform_2(%arg0: i32) -> (i32, i32) {
    %c0_i32 = arith.constant 0 : i32
    %c0_i32_0 = arith.constant 0 : i32
    %c0_i32_1 = arith.constant 0 : i32
    return %c0_i32, %c0_i32_0 : i32, i32
  }
  func.func @transform_3(%arg0: i32) -> (i32, i32) {
    %c0_i32 = arith.constant 0 : i32
    %c0_i32_0 = arith.constant 0 : i32
    %c0_i32_1 = arith.constant 0 : i32
    return %c0_i32, %c0_i32_0 : i32, i32
  }
  func.func @transform_4(%arg0: i32) -> (i32, i32) {
    %c0_i32 = arith.constant 0 : i32
    %c0_i32_0 = arith.constant 0 : i32
    %c0_i32_1 = arith.constant 0 : i32
    return %c0_i32, %c0_i32_0 : i32, i32
  }
  func.func @transform_5(%arg0: i32) -> (i32, i32) {
    %c0_i32 = arith.constant 0 : i32
    %c0_i32_0 = arith.constant 0 : i32
    %c0_i32_1 = arith.constant 0 : i32
    return %c0_i32, %c0_i32_0 : i32, i32
  }
  func.func @transform_6(%arg0: i32) -> (i32, i32) {
    %c0_i32 = arith.constant 0 : i32
    %c0_i32_0 = arith.constant 0 : i32
    %c0_i32_1 = arith.constant 0 : i32
    return %c0_i32, %c0_i32_0 : i32, i32
  }
  func.func @transform_7(%arg0: i32) -> (i32, i32) {
    %c0_i32 = arith.constant 0 : i32
    %c0_i32_0 = arith.constant 0 : i32
    %c0_i32_1 = arith.constant 0 : i32
    return %c0_i32, %c0_i32_0 : i32, i32
  }
  func.func @transform_8(%arg0: i32) -> (i32, i32) {
    %c0_i32 = arith.constant 0 : i32
    %c0_i32_0 = arith.constant 0 : i32
    %c0_i32_1 = arith.constant 0 : i32
    return %c0_i32, %c0_i32_0 : i32, i32
  }
  func.func @transform_9(%arg0: i32) -> (i32, i32) {
    %c0_i32 = arith.constant 0 : i32
    %c0_i32_0 = arith.constant 0 : i32
    %c0_i32_1 = arith.constant 0 : i32
    return %c0_i32, %c0_i32_0 : i32, i32
  }
  func.func @transform_10(%arg0: i32) -> (i32, i32) {
    %c0_i32 = arith.constant 0 : i32
    %c0_i32_0 = arith.constant 0 : i32
    return %arg0, %c0_i32 : i32, i32
  }
}

</mosaic_0001>

<llo_original>
// kernel: critic_forward.1
$region0: #{critic_forward.1}
  #allocation0 [shape = 'u32[]', space=smem, size = 0x4, offset = 0x4, fixed_abs, tag = 'smem constant byte address 0x4 - core index']
  #allocation1 [shape = 'u32[144,128]{1,0:T(1,128)}', space=vmem, size = 0x12000, scoped, tag = 'internal scratch']
  #allocation2 [shape = 'f32[8,128]{1,0:T(8,128)}', space=vmem, size = 0x1000, scoped, tag = 'scratch operand']
  #allocation3 [shape = 'f32[1,1]{1,0:T(1,128)S(1)}', space=vmem, size = 0x200, scoped, tag = 'scoped memory for critic_forward.1']
  %s0 = inlined_call_operand.vmem [shape: f32[8,8], index: 0, kind: input, shape index: {}]
  %s1 = inlined_call_operand.vmem [shape: f32[8,4], index: 1, kind: input, shape index: {}]
  %s2 = inlined_call_operand.hbm [shape: f32[128,256], index: 2, kind: input, shape index: {}]
  %s3 = inlined_call_operand.vmem [shape: f32[1,256], index: 3, kind: input, shape index: {}]
  %s4 = inlined_call_operand.hbm [shape: f32[256,128], index: 4, kind: input, shape index: {}]
  %s5 = inlined_call_operand.vmem [shape: f32[1,128], index: 5, kind: input, shape index: {}]
  %s6 = inlined_call_operand.hbm [shape: f32[128,128], index: 6, kind: input, shape index: {}]
  %s7 = inlined_call_operand.vmem [shape: f32[1,128], index: 7, kind: input, shape index: {}]
  %s8 = inlined_call_operand.vmem [shape: f32[1,128], index: 8, kind: input, shape index: {}]
  %s9 = inlined_call_operand.<no memory space> [shape: f32[1,1], index: 9, kind: input, shape index: {}]
  %s10 = inlined_call_operand.vmem [shape: f32[8,1], index: 10, kind: output, shape index: {}]
  %s11 = sld [smem:[#allocation0]]
  $region62: #{critic_forward.1} parent=0
    _
  %s13 = ssub.s32 1, %s11
  %s14 = scalar_select 0, %s13, %s11
  %v15 = vstv %s9
  %16 = vst [vmem:[#allocation3] sm:$0x1] %v15
  $region1: #{critic_forward.1} parent=0
    #allocation4 [shape = 'u8[131072]{0}', space=vmem, size = 0x20000, scoped, tag = 'input window, operand 2, single buffered']
    #allocation5 [shape = 's32[1]{0}', space=sflag, size = 0x4, scoped, tag = 'scoped memory for critic_forward.1']
    #allocation6 [shape = 'u8[131072]{0}', space=vmem, size = 0x20000, scoped, tag = 'input window, operand 4, single buffered']
    #allocation7 [shape = 's32[1]{0}', space=sflag, size = 0x4, scoped, tag = 'scoped memory for critic_forward.1']
    #allocation8 [shape = 'u8[65536]{0}', space=vmem, size = 0x10000, scoped, tag = 'input window, operand 6, single buffered']
    %17 = vsyncpa [#allocation5], 0
    %18 = vsyncpa [#allocation7], 0
    // Predicated region
    $region2: #{critic_forward.1} parent=1 // pred_check
      _
    $region3: #{critic_forward.1} parent=1 // pred_check_branch
      %20 = sbr.rel (0) target = $region5
    $region4: #{critic_forward.1} parent=1 // pred_region
      _
    $region5: #{critic_forward.1} parent=1 // pred_fallthru
      _
    // Predicated region
    $region6: #{critic_forward.1} parent=1 // pred_check
      _
    $region7: #{critic_forward.1} parent=1 // pred_check_branch
      %22 = sbr.rel (0) target = $region9
    $region8: #{critic_forward.1} parent=1 // pred_region
      _
    $region9: #{critic_forward.1} parent=1 // pred_fallthru
      _
    // Predicated region
    $region10: #{critic_forward.1} parent=1 // pred_check
      _
    $region11: #{critic_forward.1} parent=1 // pred_check_branch
      %24 = sbr.rel (0) target = $region13
    $region12: #{critic_forward.1} parent=1 // pred_region
      %s26 = ssub.s32 4096, 4096
      %27 = vsyncadd [#allocation5], %s26
      %s28 = sshll.u32 [#allocation4], 4
      %s29 = int_to_ptr.vmem [resolvable:$true] %s28
      %34 = dma.hbm_to_vmem [thread:$0]  %s2, 4096, %s29, [#allocation5], 256, 256, 16
    $region13: #{critic_forward.1} parent=1 // pred_fallthru
      _
    // Predicated region
    $region14: #{critic_forward.1} parent=1 // pred_check
      _
    $region15: #{critic_forward.1} parent=1 // pred_check_branch
      %36 = sbr.rel (0) target = $region17
    $region16: #{critic_forward.1} parent=1 // pred_region
      _
    $region17: #{critic_forward.1} parent=1 // pred_fallthru
      _
    // Predicated region
    $region18: #{critic_forward.1} parent=1 // pred_check
      _
    $region19: #{critic_forward.1} parent=1 // pred_check_branch
      %38 = sbr.rel (0) target = $region21
    $region20: #{critic_forward.1} parent=1 // pred_region
      %s40 = ssub.s32 4096, 4096
      %41 = vsyncadd [#allocation7], %s40
      %s42 = sshll.u32 [#allocation6], 4
      %s43 = int_to_ptr.vmem [resolvable:$true] %s42
      %48 = dma.hbm_to_vmem [thread:$0]  %s4, 4096, %s43, [#allocation7], 128, 128, 8
    $region21: #{critic_forward.1} parent=1 // pred_fallthru
      _
    // Predicated region
    $region22: #{critic_forward.1} parent=1 // pred_check
      _
    $region23: #{critic_forward.1} parent=1 // pred_check_branch
      %50 = sbr.rel (0) target = $region25
    $region24: #{critic_forward.1} parent=1 // pred_region
      _
    $region25: #{critic_forward.1} parent=1 // pred_fallthru
      _
    // Predicated region
    $region26: #{critic_forward.1} parent=1 // pred_check
      _
    $region27: #{critic_forward.1} parent=1 // pred_check_branch
      %52 = sbr.rel (0) target = $region29
    $region28: #{critic_forward.1} parent=1 // pred_region
      %s54 = ssub.s32 2048, 2048
      %55 = vsyncadd [#allocation7], %s54
      %s56 = sshll.u32 [#allocation8], 4
      %s57 = int_to_ptr.vmem [resolvable:$true] %s56
      %62 = dma.hbm_to_vmem [thread:$0]  %s6, 2048, %s57, [#allocation7], 128, 128, 8
    $region29: #{critic_forward.1} parent=1 // pred_fallthru
      _
    // Predicated region
    $region30: #{critic_forward.1} parent=1 // pred_check
      _
    $region31: #{critic_forward.1} parent=1 // pred_check_branch
      %64 = sbr.rel (0) target = $region33
    $region32: #{critic_forward.1} parent=1 // pred_region
      _
    $region33: #{critic_forward.1} parent=1 // pred_fallthru
      _
    // Predicated region
    $region34: #{critic_forward.1} parent=1 // pred_check
      _
    $region35: #{critic_forward.1} parent=1 // pred_check_branch
      %66 = sbr.rel (0) target = $region37
    $region36: #{critic_forward.1} parent=1 // pred_region
      _
    $region37: #{critic_forward.1} parent=1 // pred_fallthru
      _
    // Predicated region
    $region38: #{critic_forward.1} parent=1 // pred_check
      _
    $region39: #{critic_forward.1} parent=1 // pred_check_branch
      %68 = sbr.rel (0) target = $region41
    $region40: #{critic_forward.1} parent=1 // pred_region
      _
    $region41: #{critic_forward.1} parent=1 // pred_fallthru
      _
    // Predicated region
    $region42: #{critic_forward.1} parent=1 // pred_check
      _
    $region43: #{critic_forward.1} parent=1 // pred_check_branch
      %70 = sbr.rel (0) target = $region45
    $region44: #{critic_forward.1} parent=1 // pred_region
      %71 = dma.done [#allocation5], 4096
    $region45: #{critic_forward.1} parent=1 // pred_fallthru
      _
    // Predicated region
    $region46: #{critic_forward.1} parent=1 // pred_check
      _
    $region47: #{critic_forward.1} parent=1 // pred_check_branch
      %73 = sbr.rel (0) target = $region49
    $region48: #{critic_forward.1} parent=1 // pred_region
      %74 = dma.done [#allocation7], 4096
    $region49: #{critic_forward.1} parent=1 // pred_fallthru
      _
    // Predicated region
    $region50: #{critic_forward.1} parent=1 // pred_check
      _
    $region51: #{critic_forward.1} parent=1 // pred_check_branch
      %76 = sbr.rel (0) target = $region53
    $region52: #{critic_forward.1} parent=1 // pred_region
      %77 = dma.done [#allocation7], 2048
    $region53: #{critic_forward.1} parent=1 // pred_fallthru
      _
    %78 = vst [vmem:[#allocation2] sm:$0xff] 0.0
    %v79 = vld [vmem:[%s0] sm:$0xff]
    %vm80 = vcmask 64512
    %81 = vst.msk [vmem:[#allocation2] sm:$0xff] %vm80, %v79
    %v82 = vld [vmem:[%s1] sm:$0xff]
    %84 = vrot.lane.b32.xlu0 %v82, 8
    %v85 = vpop.permute.xlu0 %84
    %vm87 = vcmask 97344
    %88 = vst.msk [vmem:[#allocation2] sm:$0xff] %vm87, %v85
    %v89 = vld [vmem:[#allocation2] sm:$0xff]
    %v90 = vld [vmem:[#allocation4] sm:$0xff]
    %v91 = vld [vmem:[#allocation4 + $0x8] sm:$0xff]
    %v92 = vld [vmem:[#allocation4 + $0x10] sm:$0xff]
    %v93 = vld [vmem:[#allocation4 + $0x18] sm:$0xff]
    %v94 = vld [vmem:[#allocation4 + $0x20] sm:$0xff]
    %v95 = vld [vmem:[#allocation4 + $0x28] sm:$0xff]
    %v96 = vld [vmem:[#allocation4 + $0x30] sm:$0xff]
    %v97 = vld [vmem:[#allocation4 + $0x38] sm:$0xff]
    %v98 = vld [vmem:[#allocation4 + $0x40] sm:$0xff]
    %v99 = vld [vmem:[#allocation4 + $0x48] sm:$0xff]
    %v100 = vld [vmem:[#allocation4 + $0x50] sm:$0xff]
    %v101 = vld [vmem:[#allocation4 + $0x58] sm:$0xff]
    %v102 = vld [vmem:[#allocation4 + $0x60] sm:$0xff]
    %v103 = vld [vmem:[#allocation4 + $0x68] sm:$0xff]
    %v104 = vld [vmem:[#allocation4 + $0x70] sm:$0xff]
    %v105 = vld [vmem:[#allocation4 + $0x78] sm:$0xff]
    %v106 = vld [vmem:[#allocation4 + $0x80] sm:$0xff]
    %v107 = vld [vmem:[#allocation4 + $0x88] sm:$0xff]
    %v108 = vld [vmem:[#allocation4 + $0x90] sm:$0xff]
    %v109 = vld [vmem:[#allocation4 + $0x98] sm:$0xff]
    %v110 = vld [vmem:[#allocation4 + $0xa0] sm:$0xff]
    %v111 = vld [vmem:[#allocation4 + $0xa8] sm:$0xff]
    %v112 = vld [vmem:[#allocation4 + $0xb0] sm:$0xff]
    %v113 = vld [vmem:[#allocation4 + $0xb8] sm:$0xff]
    %v114 = vld [vmem:[#allocation4 + $0xc0] sm:$0xff]
    %v115 = vld [vmem:[#allocation4 + $0xc8] sm:$0xff]
    %v116 = vld [vmem:[#allocation4 + $0xd0] sm:$0xff]
    %v117 = vld [vmem:[#allocation4 + $0xd8] sm:$0xff]
    %v118 = vld [vmem:[#allocation4 + $0xe0] sm:$0xff]
    %v119 = vld [vmem:[#allocation4 + $0xe8] sm:$0xff]
    %v120 = vld [vmem:[#allocation4 + $0xf0] sm:$0xff]
    %v121 = vld [vmem:[#allocation4 + $0xf8] sm:$0xff]
    %v122 = vld [vmem:[%s3] sm:$0x3]
    %v124 = vlaneseq
    %v125 = vshrl.u32 %v124, 7
    %v126 = vsub.s32 0, %v125
    %v127 = vrot.slane %v122, %v126
    %v128 = vlaneseq
    %v129 = vshrl.u32 %v128, 7
    %v130 = vsub.s32 1, %v129
    %v131 = vrot.slane %v122, %v130
    %134 = vmatprep.subr.mxu0 %v91
    %135 = vmatpush1.msra.mxu0 %v90
    %136 = vmatprep.subr.mxu0 %v93
    %137 = vmatpush1.msra.mxu0 %v92
    %138 = vmatprep.subr.mxu0 %v95
    %139 = vmatpush1.msra.mxu0 %v94
    %140 = vmatprep.subr.mxu0 %v97
    %141 = vmatpush1.msra.mxu0 %v96
    %142 = vmatprep.subr.mxu0 %v99
    %143 = vmatpush1.msra.mxu0 %v98
    %144 = vmatprep.subr.mxu0 %v101
    %145 = vmatpush1.msra.mxu0 %v100
    %146 = vmatprep.subr.mxu0 %v103
    %147 = vmatpush1.msra.mxu0 %v102
    %148 = vmatprep.subr.mxu0 %v105
    %149 = vmatpush1.msra.mxu0 %v104
    %150 = vmatprep.subr.mxu0 %v107
    %151 = vmatpush1.msra.mxu0 %v106
    %152 = vmatprep.subr.mxu0 %v109
    %153 = vmatpush1.msra.mxu0 %v108
    %154 = vmatprep.subr.mxu0 %v111
    %155 = vmatpush1.msra.mxu0 %v110
    %156 = vmatprep.subr.mxu0 %v113
    %157 = vmatpush1.msra.mxu0 %v112
    %158 = vmatprep.subr.mxu0 %v115
    %159 = vmatpush1.msra.mxu0 %v114
    %160 = vmatprep.subr.mxu0 %v117
    %161 = vmatpush1.msra.mxu0 %v116
    %162 = vmatprep.subr.mxu0 %v119
    %163 = vmatpush1.msra.mxu0 %v118
    %164 = vmatprep.subr.mxu0 %v121
    %165 = vmatpush1.msra.mxu0 %v120
    %166 = vmatprep.subr.mxu0 0.0
    %167 = vmatpush1.msra.mxu0 0.0
    %168 = vmatprep.subr.mxu0 0.0
    %169 = vmatpush1.msra.mxu0 0.0
    %170 = vmatprep.subr.mxu0 0.0
    %171 = vmatpush1.msra.mxu0 0.0
    %172 = vmatprep.subr.mxu0 0.0
    %173 = vmatpush1.msra.mxu0 0.0
    %174 = vmatprep.subr.mxu0 0.0
    %175 = vmatpush1.msra.mxu0 0.0
    %176 = vmatprep.subr.mxu0 0.0
    %177 = vmatpush1.msra.mxu0 0.0
    %178 = vmatprep.subr.mxu0 0.0
    %179 = vmatpush1.msra.mxu0 0.0
    %180 = vmatprep.subr.mxu0 0.0
    %181 = vmatpush1.msra.mxu0 0.0
    %182 = vmatprep.subr.mxu0 0.0
    %183 = vmatpush1.msra.mxu0 0.0
    %184 = vmatprep.subr.mxu0 0.0
    %185 = vmatpush1.msra.mxu0 0.0
    %186 = vmatprep.subr.mxu0 0.0
    %187 = vmatpush1.msra.mxu0 0.0
    %188 = vmatprep.subr.mxu0 0.0
    %189 = vmatpush1.msra.mxu0 0.0
    %190 = vmatprep.subr.mxu0 0.0
    %191 = vmatpush1.msra.mxu0 0.0
    %192 = vmatprep.subr.mxu0 0.0
    %193 = vmatpush1.msra.mxu0 0.0
    %194 = vmatprep.subr.mxu0 0.0
    %195 = vmatpush1.msra.mxu0 0.0
    %196 = vmatprep.subr.mxu0 0.0
    %197 = vmatpush1.msra.mxu0 0.0
    %198 = vmatprep.mubr.f32.mxu0 0.0
    %199 = vmatmul.mubr.f32.gmra.mrb[0].mxu0 %v89
    %v200 = vpop.f32.mrb[0].mxu0
    %v201 = vadd.f32 %v127, %v200
    %v202 = vpop.f32.mrb[0].mxu0
    %v203 = vadd.f32 %v131, %v202
    %204 = vdwg.mxu0
    %v205 = vmax.f32 %v201, 0.0
    %v206 = vmax.f32 %v203, 0.0
    %v207 = vld [vmem:[#allocation6] sm:$0xff]
    %v208 = vld [vmem:[#allocation6 + $0x8] sm:$0xff]
    %v209 = vld [vmem:[#allocation6 + $0x10] sm:$0xff]
    %v210 = vld [vmem:[#allocation6 + $0x18] sm:$0xff]
    %v211 = vld [vmem:[#allocation6 + $0x20] sm:$0xff]
    %v212 = vld [vmem:[#allocation6 + $0x28] sm:$0xff]
    %v213 = vld [vmem:[#allocation6 + $0x30] sm:$0xff]
    %v214 = vld [vmem:[#allocation6 + $0x38] sm:$0xff]
    %v215 = vld [vmem:[#allocation6 + $0x40] sm:$0xff]
    %v216 = vld [vmem:[#allocation6 + $0x48] sm:$0xff]
    %v217 = vld [vmem:[#allocation6 + $0x50] sm:$0xff]
    %v218 = vld [vmem:[#allocation6 + $0x58] sm:$0xff]
    %v219 = vld [vmem:[#allocation6 + $0x60] sm:$0xff]
    %v220 = vld [vmem:[#allocation6 + $0x68] sm:$0xff]
    %v221 = vld [vmem:[#allocation6 + $0x70] sm:$0xff]
    %v222 = vld [vmem:[#allocation6 + $0x78] sm:$0xff]
    %v223 = vld [vmem:[#allocation6 + $0x80] sm:$0xff]
    %v224 = vld [vmem:[#allocation6 + $0x88] sm:$0xff]
    %v225 = vld [vmem:[#allocation6 + $0x90] sm:$0xff]
    %v226 = vld [vmem:[#allocation6 + $0x98] sm:$0xff]
    %v227 = vld [vmem:[#allocation6 + $0xa0] sm:$0xff]
    %v228 = vld [vmem:[#allocation6 + $0xa8] sm:$0xff]
    %v229 = vld [vmem:[#allocation6 + $0xb0] sm:$0xff]
    %v230 = vld [vmem:[#allocation6 + $0xb8] sm:$0xff]
    %v231 = vld [vmem:[#allocation6 + $0xc0] sm:$0xff]
    %v232 = vld [vmem:[#allocation6 + $0xc8] sm:$0xff]
    %v233 = vld [vmem:[#allocation6 + $0xd0] sm:$0xff]
    %v234 = vld [vmem:[#allocation6 + $0xd8] sm:$0xff]
    %v235 = vld [vmem:[#allocation6 + $0xe0] sm:$0xff]
    %v236 = vld [vmem:[#allocation6 + $0xe8] sm:$0xff]
    %v237 = vld [vmem:[#allocation6 + $0xf0] sm:$0xff]
    %v238 = vld [vmem:[#allocation6 + $0xf8] sm:$0xff]
    %v239 = vld [vmem:[%s5] sm:$0x1]
    %v241 = vlaneseq
    %v242 = vshrl.u32 %v241, 7
    %v243 = vsub.s32 0, %v242
    %v244 = vrot.slane %v239, %v243
    %246 = vmatprep.subr.mxu0 0.0
    %247 = vmatpush1.msra.mxu0 %v207
    %248 = vmatprep.subr.mxu0 0.0
    %249 = vmatpush1.msra.mxu0 %v208
    %250 = vmatprep.subr.mxu0 0.0
    %251 = vmatpush1.msra.mxu0 %v209
    %252 = vmatprep.subr.mxu0 0.0
    %253 = vmatpush1.msra.mxu0 %v210
    %254 = vmatprep.subr.mxu0 0.0
    %255 = vmatpush1.msra.mxu0 %v211
    %256 = vmatprep.subr.mxu0 0.0
    %257 = vmatpush1.msra.mxu0 %v212
    %258 = vmatprep.subr.mxu0 0.0
    %259 = vmatpush1.msra.mxu0 %v213
    %260 = vmatprep.subr.mxu0 0.0
    %261 = vmatpush1.msra.mxu0 %v214
    %262 = vmatprep.subr.mxu0 0.0
    %263 = vmatpush1.msra.mxu0 %v215
    %264 = vmatprep.subr.mxu0 0.0
    %265 = vmatpush1.msra.mxu0 %v216
    %266 = vmatprep.subr.mxu0 0.0
    %267 = vmatpush1.msra.mxu0 %v217
    %268 = vmatprep.subr.mxu0 0.0
    %269 = vmatpush1.msra.mxu0 %v218
    %270 = vmatprep.subr.mxu0 0.0
    %271 = vmatpush1.msra.mxu0 %v219
    %272 = vmatprep.subr.mxu0 0.0
    %273 = vmatpush1.msra.mxu0 %v220
    %274 = vmatprep.subr.mxu0 0.0
    %275 = vmatpush1.msra.mxu0 %v221
    %276 = vmatprep.subr.mxu0 0.0
    %277 = vmatpush1.msra.mxu0 %v222
    %278 = vmatprep.subr.mxu0 0.0
    %279 = vmatpush1.msra.mxu0 %v223
    %280 = vmatprep.subr.mxu0 0.0
    %281 = vmatpush1.msra.mxu0 %v224
    %282 = vmatprep.subr.mxu0 0.0
    %283 = vmatpush1.msra.mxu0 %v225
    %284 = vmatprep.subr.mxu0 0.0
    %285 = vmatpush1.msra.mxu0 %v226
    %286 = vmatprep.subr.mxu0 0.0
    %287 = vmatpush1.msra.mxu0 %v227
    %288 = vmatprep.subr.mxu0 0.0
    %289 = vmatpush1.msra.mxu0 %v228
    %290 = vmatprep.subr.mxu0 0.0
    %291 = vmatpush1.msra.mxu0 %v229
    %292 = vmatprep.subr.mxu0 0.0
    %293 = vmatpush1.msra.mxu0 %v230
    %294 = vmatprep.subr.mxu0 0.0
    %295 = vmatpush1.msra.mxu0 %v231
    %296 = vmatprep.subr.mxu0 0.0
    %297 = vmatpush1.msra.mxu0 %v232
    %298 = vmatprep.subr.mxu0 0.0
    %299 = vmatpush1.msra.mxu0 %v233
    %300 = vmatprep.subr.mxu0 0.0
    %301 = vmatpush1.msra.mxu0 %v234
    %302 = vmatprep.subr.mxu0 0.0
    %303 = vmatpush1.msra.mxu0 %v235
    %304 = vmatprep.subr.mxu0 0.0
    %305 = vmatpush1.msra.mxu0 %v236
    %306 = vmatprep.subr.mxu0 0.0
    %307 = vmatpush1.msra.mxu0 %v237
    %308 = vmatprep.subr.mxu0 0.0
    %309 = vmatpush1.msra.mxu0 %v238
    %310 = vmatprep.mubr.f32.mxu0 %v206
    %311 = vmatmul.mubr.f32.gmra.mrb[0].mxu0 %v205
    %v312 = vpop.f32.mrb[0].mxu0
    %v313 = vadd.f32 %v244, %v312
    %v314 = vpop.f32.mrb[0].mxu0
    %315 = vdwg.mxu0
    %v316 = vmax.f32 %v313, 0.0
    %v317 = vld [vmem:[#allocation8] sm:$0xff]
    %v318 = vld [vmem:[#allocation8 + $0x8] sm:$0xff]
    %v319 = vld [vmem:[#allocation8 + $0x10] sm:$0xff]
    %v320 = vld [vmem:[#allocation8 + $0x18] sm:$0xff]
    %v321 = vld [vmem:[#allocation8 + $0x20] sm:$0xff]
    %v322 = vld [vmem:[#allocation8 + $0x28] sm:$0xff]
    %v323 = vld [vmem:[#allocation8 + $0x30] sm:$0xff]
    %v324 = vld [vmem:[#allocation8 + $0x38] sm:$0xff]
    %v325 = vld [vmem:[#allocation8 + $0x40] sm:$0xff]
    %v326 = vld [vmem:[#allocation8 + $0x48] sm:$0xff]
    %v327 = vld [vmem:[#allocation8 + $0x50] sm:$0xff]
    %v328 = vld [vmem:[#allocation8 + $0x58] sm:$0xff]
    %v329 = vld [vmem:[#allocation8 + $0x60] sm:$0xff]
    %v330 = vld [vmem:[#allocation8 + $0x68] sm:$0xff]
    %v331 = vld [vmem:[#allocation8 + $0x70] sm:$0xff]
    %v332 = vld [vmem:[#allocation8 + $0x78] sm:$0xff]
    %v333 = vld [vmem:[%s7] sm:$0x1]
    %v335 = vlaneseq
    %v336 = vshrl.u32 %v335, 7
    %v337 = vsub.s32 0, %v336
    %v338 = vrot.slane %v333, %v337
    %340 = vmatprep.subr.mxu0 0.0
    %341 = vmatpush1.msra.mxu0 %v317
    %342 = vmatprep.subr.mxu0 0.0
    %343 = vmatpush1.msra.mxu0 %v318
    %344 = vmatprep.subr.mxu0 0.0
    %345 = vmatpush1.msra.mxu0 %v319
    %346 = vmatprep.subr.mxu0 0.0
    %347 = vmatpush1.msra.mxu0 %v320
    %348 = vmatprep.subr.mxu0 0.0
    %349 = vmatpush1.msra.mxu0 %v321
    %350 = vmatprep.subr.mxu0 0.0
    %351 = vmatpush1.msra.mxu0 %v322
    %352 = vmatprep.subr.mxu0 0.0
    %353 = vmatpush1.msra.mxu0 %v323
    %354 = vmatprep.subr.mxu0 0.0
    %355 = vmatpush1.msra.mxu0 %v324
    %356 = vmatprep.subr.mxu0 0.0
    %357 = vmatpush1.msra.mxu0 %v325
    %358 = vmatprep.subr.mxu0 0.0
    %359 = vmatpush1.msra.mxu0 %v326
    %360 = vmatprep.subr.mxu0 0.0
    %361 = vmatpush1.msra.mxu0 %v327
    %362 = vmatprep.subr.mxu0 0.0
    %363 = vmatpush1.msra.mxu0 %v328
    %364 = vmatprep.subr.mxu0 0.0
    %365 = vmatpush1.msra.mxu0 %v329
    %366 = vmatprep.subr.mxu0 0.0
    %367 = vmatpush1.msra.mxu0 %v330
    %368 = vmatprep.subr.mxu0 0.0
    %369 = vmatpush1.msra.mxu0 %v331
    %370 = vmatprep.subr.mxu0 0.0
    %371 = vmatpush1.msra.mxu0 %v332
    %372 = vmatprep.subr.mxu0 0.0
    %373 = vmatpush1.msra.mxu0 0.0
    %374 = vmatprep.subr.mxu0 0.0
    %375 = vmatpush1.msra.mxu0 0.0
    %376 = vmatprep.subr.mxu0 0.0
    %377 = vmatpush1.msra.mxu0 0.0
    %378 = vmatprep.subr.mxu0 0.0
    %379 = vmatpush1.msra.mxu0 0.0
    %380 = vmatprep.subr.mxu0 0.0
    %381 = vmatpush1.msra.mxu0 0.0
    %382 = vmatprep.subr.mxu0 0.0
    %383 = vmatpush1.msra.mxu0 0.0
    %384 = vmatprep.subr.mxu0 0.0
    %385 = vmatpush1.msra.mxu0 0.0
    %386 = vmatprep.subr.mxu0 0.0
    %387 = vmatpush1.msra.mxu0 0.0
    %388 = vmatprep.subr.mxu0 0.0
    %389 = vmatpush1.msra.mxu0 0.0
    %390 = vmatprep.subr.mxu0 0.0
    %391 = vmatpush1.msra.mxu0 0.0
    %392 = vmatprep.subr.mxu0 0.0
    %393 = vmatpush1.msra.mxu0 0.0
    %394 = vmatprep.subr.mxu0 0.0
    %395 = vmatpush1.msra.mxu0 0.0
    %396 = vmatprep.subr.mxu0 0.0
    %397 = vmatpush1.msra.mxu0 0.0
    %398 = vmatprep.subr.mxu0 0.0
    %399 = vmatpush1.msra.mxu0 0.0
    %400 = vmatprep.subr.mxu0 0.0
    %401 = vmatpush1.msra.mxu0 0.0
    %402 = vmatprep.subr.mxu0 0.0
    %403 = vmatpush1.msra.mxu0 0.0
    %404 = vmatprep.mubr.f32.mxu0 0.0
    %405 = vmatmul.mubr.f32.gmra.mrb[0].mxu0 %v316
    %v406 = vpop.f32.mrb[0].mxu0
    %v407 = vadd.f32 %v338, %v406
    %v408 = vpop.f32.mrb[0].mxu0
    %409 = vdwg.mxu0
    %v410 = vmax.f32 %v407, 0.0
    %v411 = vld [vmem:[%s8] sm:$0x1]
    %v413 = vlaneseq
    %v414 = vshrl.u32 %v413, 7
    %v415 = vsub.s32 0, %v414
    %v416 = vrot.slane %v411, %v415
    %v418 = vmul.f32 %v410, %v416
    %419 = vadd.xlane.f32.xlu0 %v418
    %v420 = vpop.xlane.xlu0 %419
    %v421 = vld [vmem:[#allocation3] sm:$0x1]
    %v423 = vlaneseq
    %v424 = vshrl.u32 %v423, 7
    %v425 = vsub.s32 0, %v424
    %v426 = vrot.slane %v421, %v425
    %v428 = vadd.f32 %v420, %v426
    %vm429 = vcmask 7168
    %430 = vst.msk [vmem:[%s10] sm:$0xff] %vm429, %v428
    // Predicated region
    $region54: #{critic_forward.1} parent=1 // pred_check
      _
    $region55: #{critic_forward.1} parent=1 // pred_check_branch
      %432 = sbr.rel (0) target = $region57
    $region56: #{critic_forward.1} parent=1 // pred_region
      _
    $region57: #{critic_forward.1} parent=1 // pred_fallthru
      _
    // Predicated region
    $region58: #{critic_forward.1} parent=1 // pred_check
      _
    $region59: #{critic_forward.1} parent=1 // pred_check_branch
      %434 = sbr.rel (0) target = $region61
    $region60: #{critic_forward.1} parent=1 // pred_region
      _
    $region61: #{critic_forward.1} parent=1 // pred_fallthru
      _
    %435 = vsyncpa [#allocation5], 1
    %436 = vsyncpa [#allocation7], 1

</llo_original>
